<compile_context>
chip_gen: v7x
topology: tpu7x:2x2x1
jax: 0.10.0
libtpu: 0.0.40
codegen_flags: <defaults>
</compile_context>

<pallas_src>
import functools

import jax
import jax.numpy as jnp
from jax.experimental import pallas as pl
from jax.experimental.pallas import tpu as pltpu


def _round_up(x, m):
    return ((x + m - 1) // m) * m


def _capsule_loss_kernel(x_ref, tgt_ref, out_ref, *, n_labels, caps_dim,
                         tile_n, n_valid):
    # x_ref:   (TN, L*D) capsule outputs for this batch tile (f32 or bf16)
    # tgt_ref: (TN, 1)   int32 labels (padded rows carry L -> one-hot all zero)
    # out_ref: (8, 128)  per-tile partials: [0,0]=loss sum, [0,1]=top1, [0,2]=top5
    L, D, TN = n_labels, caps_dim, tile_n
    LD = L * D

    x = x_ref[...].astype(jnp.float32)      # bf16 inputs upcast in-kernel
    tgt = tgt_ref[...]                      # (TN, 1) int32

    # ---- per-capsule squared length on the MXU -----------------------------
    # sum_d x[n,l,d]^2 == (x*x) @ G, with G the 0/1 block-diagonal selection
    # matrix built in-kernel from iotas (no extra HBM stream / double buffer).
    ld_i = jax.lax.broadcasted_iota(jnp.int32, (LD, L), 0)
    l_i = jax.lax.broadcasted_iota(jnp.int32, (LD, L), 1)
    g = jnp.where(jnp.logical_and(ld_i >= l_i * D, ld_i < (l_i + 1) * D),
                  1.0, 0.0).astype(jnp.bfloat16)

    # Split-f32 trick: x2 == hi + lo exactly (hi = bf16 head, lo = bf16 tail),
    # G is exact in bf16, accumulation is f32 -> ~1e-5 relative error with only
    # 2 DEFAULT-precision MXU passes (vs 6 for Precision.HIGHEST).
    x2 = x * x
    hi = x2.astype(jnp.bfloat16)
    lo = (x2 - hi.astype(jnp.float32)).astype(jnp.bfloat16)
    sq = (jnp.dot(hi, g, preferred_element_type=jnp.float32)
          + jnp.dot(lo, g, preferred_element_type=jnp.float32))     # (TN, L)

    pred = jnp.sqrt(sq + 1e-6)                                       # lengths

    # In-kernel one-hot (no HBM one-hot tensor).
    lane_l = jax.lax.broadcasted_iota(jnp.int32, pred.shape, 1)      # (TN, L)
    oh = (lane_l == tgt).astype(jnp.float32)

    # Margin loss with the module's exact clamp(0, 1e6) semantics.
    pos = jnp.clip(0.9 - pred, 0.0, 1e6)
    neg = jnp.clip(pred - 0.1, 0.0, 1e6)
    loss = oh * (pos * pos) + (1.0 - oh) * (0.5 * (neg * neg))       # (TN, L)

    # top-1 / top-5 flags via the rank of the target-class score
    # (matches torch.topk except under exact float ties on the target score).
    tgt_score = jnp.sum(pred * oh, axis=1, keepdims=True)            # (TN, 1)
    rank = jnp.sum((pred > tgt_score).astype(jnp.float32), axis=1, keepdims=True)
    top1 = (rank < 1.0).astype(jnp.float32)
    top5 = (rank < 5.0).astype(jnp.float32)

    # Ragged-tail mask against the TRUE batch size.  The activation is NOT
    # padded in HBM, so OOB rows of the last tile may hold garbage (NaN/Inf):
    # mask with where/select, never by multiplying.
    row = jax.lax.broadcasted_iota(jnp.int32, (TN, 1), 0)
    valid = (pl.program_id(0) * TN + row) < n_valid                  # (TN, 1)
    loss = jnp.where(valid, loss, 0.0)
    top1 = jnp.where(valid, top1, 0.0)
    top5 = jnp.where(valid, top5, 0.0)

    # Tile-level partial sums (masked rows contribute exactly zero).
    loss_sum = jnp.sum(loss)
    top1_sum = jnp.sum(top1)
    top5_sum = jnp.sum(top5)

    # Pack into one fully dense (8, 128) store (unmasked vst).
    r8 = jax.lax.broadcasted_iota(jnp.int32, (8, 128), 0)
    ln = jax.lax.broadcasted_iota(jnp.int32, (8, 128), 1)
    packed = jnp.where((r8 == 0) & (ln == 0), loss_sum,
             jnp.where((r8 == 0) & (ln == 1), top1_sum,
             jnp.where((r8 == 0) & (ln == 2), top5_sum, 0.0)))
    out_ref[...] = packed


def _vmem_capacity_bytes():
    try:
        return int(pltpu.get_tpu_info().vmem_capacity_bytes)
    except Exception:
        return 64 << 20   # conservative default (v7x per-TensorCore VMEM)


def capsule_loss(tensor, targets, n_labels, block_n=None):
    """tensor: (N, L, D) capsule outputs (f32 or bf16); targets: (N,) int labels."""
    N, L, D = tensor.shape
    assert L == n_labels
    LD = L * D

    # 2D presentation: capsule dim folded into the lane axis (layout only).
    x2d = tensor.reshape(N, LD)
    tgt = targets.astype(jnp.int32)

    # --- batch tile size -----------------------------------------------------
    #  * 8192 rows on 128 MiB-VMEM parts (v5e/v6e), 4096 on 64 MiB (v7x).
    #  * Cap at ceil(N/2) rows so batches <= 2*block_n still produce >= 2 grid
    #    steps and the "parallel" axis can shard across v7x's two TensorCores.
    vmem_cap = _vmem_capacity_bytes()
    if block_n is None:
        if vmem_cap >= (96 << 20):
            block_n = 8192
        elif vmem_cap >= (48 << 20):
            block_n = 4096
        else:
            block_n = 1024
    tn = max(8, min(_round_up(block_n, 8), _round_up(pl.cdiv(N, 2), 8)))
    num_tiles = pl.cdiv(N, tn)
    n_pad = num_tiles * tn

    # Only the tiny label vector is padded (out-of-range label -> one-hot all
    # zero).  The big activation tensor is NOT padded: the ragged tail is
    # masked in-kernel, saving a full extra HBM read+write pass.
    if n_pad != N:
        tgt = jnp.pad(tgt, (0, n_pad - N), constant_values=L)
    tgt2d = tgt.reshape(n_pad, 1)

    vmem_limit = None
    if vmem_cap >= (48 << 20):
        vmem_limit = min(vmem_cap - (16 << 20), 80 << 20)

    kernel = functools.partial(
        _capsule_loss_kernel, n_labels=L, caps_dim=D, tile_n=tn, n_valid=N)

    partials = pl.pallas_call(
        kernel,
        grid=(num_tiles,),
        in_specs=[
            pl.BlockSpec((tn, LD), lambda i: (i, 0)),
            pl.BlockSpec((tn, 1), lambda i: (i, 0)),
        ],
        out_specs=pl.BlockSpec((None, 8, 128), lambda i: (i, 0, 0)),
        out_shape=jax.ShapeDtypeStruct((num_tiles, 8, 128), jnp.float32),
        compiler_params=pltpu.CompilerParams(
            dimension_semantics=("parallel",),
            vmem_limit_bytes=vmem_limit),
    )(x2d, tgt2d)

    tot = jnp.sum(partials, axis=0)          # one tiny XLA reduce over partials
    loss = tot[0, 0] / N                     # loss.sum(1).mean() over the TRUE N
    top1 = tot[0, 1] * (100.0 / N)           # percent
    top5 = tot[0, 2] * (100.0 / N)           # percent
    return loss, (top1, top5)


def _reference(tensor, targets, n_labels):
    onehot = jax.nn.one_hot(targets, n_labels, dtype=jnp.float32)
    pred = jnp.sqrt(jnp.sum(tensor.astype(jnp.float32) ** 2, axis=2) + 1e-6)
    loss = onehot * jnp.clip(0.9 - pred, 0.0, 1e6) ** 2 \
        + (1.0 - onehot) * 0.5 * jnp.clip(pred - 0.1, 0.0, 1e6) ** 2
    loss = jnp.sum(loss, axis=1).mean()
    top5_idx = jax.lax.top_k(pred, 5)[1]
    correct = (top5_idx == targets[:, None])
    top1 = correct[:, :1].sum() * (100.0 / tensor.shape[0])
    top5 = correct.sum() * (100.0 / tensor.shape[0])
    return loss, (top1, top5)


if __name__ == "__main__":
    key = jax.random.PRNGKey(0)
    k1, k2 = jax.random.split(key)

    # Small capsule-net shapes: 13 samples (exercises the ragged-tail mask and
    # the 2-tile grid), 10 label capsules of dimension 16.
    N, n_labels, D = 13, 10, 16
    x = jax.random.normal(k1, (N, n_labels, D), dtype=jnp.float32) * 0.2
    targets = jax.random.randint(k2, (N,), 0, n_labels, dtype=jnp.int32)

    loss, (top1, top5) = capsule_loss(x, targets, n_labels)
    jax.block_until_ready((loss, top1, top5))

    # sanity check against a pure-JAX reference
    ref_loss, (ref_top1, ref_top5) = _reference(x, targets, n_labels)
    assert jnp.allclose(loss, ref_loss, atol=1e-4, rtol=1e-4), (loss, ref_loss)
    assert jnp.allclose(top1, ref_top1), (top1, ref_top1)
    assert jnp.allclose(top5, ref_top5), (top5, ref_top5)

    print("KERNEL_OK")
</pallas_src>

<mosaic_0001>
module attributes {stable_mosaic.version = 11 : i64} {
  func.func @_capsule_loss_kernel(%arg0: i32, %arg1: memref<8x160xf32, #tpu.memory_space<vmem>>, %arg2: memref<8x1xi32, #tpu.memory_space<vmem>>, %arg3: memref<1x8x128xf32, #tpu.memory_space<vmem>>) attributes {dimension_semantics = [#tpu.dimension_semantics<parallel>], iteration_bounds = array<i64: 2>, scalar_prefetch = 0 : i64, scratch_operands = 0 : i64, tpu.core_type = #tpu.core_type<tc>, window_params = [{transform_indices = @transform_0, window_bounds = array<i64: 8, 160>}, {transform_indices = @transform_1, window_bounds = array<i64: 8, 1>}, {transform_indices = @transform_2, window_bounds = array<i64: 1, 8, 128>}]} {
    %c0 = arith.constant 0 : index
    %c0_0 = arith.constant 0 : index
    %0 = vector.load %arg1[%c0, %c0_0] : memref<8x160xf32, #tpu.memory_space<vmem>>, vector<8x160xf32>
    %c0_1 = arith.constant 0 : index
    %c0_2 = arith.constant 0 : index
    %1 = vector.load %arg2[%c0_1, %c0_2] : memref<8x1xi32, #tpu.memory_space<vmem>>, vector<8x1xi32>
    %2 = tpu.iota {dimensions = array<i32: 0>} : vector<160x10xi32>
    %3 = tpu.iota {dimensions = array<i32: 1>} : vector<160x10xi32>
    %c16_i32 = arith.constant 16 : i32
    %4 = vector.broadcast %c16_i32 : i32 to vector<160x10xi32>
    %5 = arith.muli %3, %4 : vector<160x10xi32>
    %6 = arith.cmpi sge, %2, %5 : vector<160x10xi32>
    %c1_i32 = arith.constant 1 : i32
    %7 = vector.broadcast %c1_i32 : i32 to vector<160x10xi32>
    %8 = arith.addi %3, %7 : vector<160x10xi32>
    %c16_i32_3 = arith.constant 16 : i32
    %9 = vector.broadcast %c16_i32_3 : i32 to vector<160x10xi32>
    %10 = arith.muli %8, %9 : vector<160x10xi32>
    %11 = arith.cmpi slt, %2, %10 : vector<160x10xi32>
    %12 = arith.andi %6, %11 : vector<160x10xi1>
    %cst = arith.constant 1.000000e+00 : f32
    %cst_4 = arith.constant 0.000000e+00 : f32
    %13 = vector.broadcast %cst : f32 to vector<160x10xf32>
    %14 = vector.broadcast %cst_4 : f32 to vector<160x10xf32>
    %15 = arith.select %12, %13, %14 : vector<160x10xi1>, vector<160x10xf32>
    %16 = arith.truncf %15 : vector<160x10xf32> to vector<160x10xbf16>
    %17 = arith.mulf %0, %0 : vector<8x160xf32>
    %18 = arith.truncf %17 : vector<8x160xf32> to vector<8x160xbf16>
    %19 = arith.extf %18 : vector<8x160xbf16> to vector<8x160xf32>
    %20 = arith.subf %17, %19 : vector<8x160xf32>
    %21 = arith.truncf %20 : vector<8x160xf32> to vector<8x160xbf16>
    %cst_5 = arith.constant dense<0.000000e+00> : vector<8x10xf32>
    %22 = tpu.matmul %18, %16, %cst_5 {dimension_numbers = #tpu.dot_dimension_numbers<[1], [0], [0], [1], [0, 0, 1, 1], [], []>} : vector<8x160xbf16>, vector<160x10xbf16>, vector<8x10xf32> -> vector<8x10xf32>
    %cst_6 = arith.constant dense<0.000000e+00> : vector<8x10xf32>
    %23 = tpu.matmul %21, %16, %cst_6 {dimension_numbers = #tpu.dot_dimension_numbers<[1], [0], [0], [1], [0, 0, 1, 1], [], []>} : vector<8x160xbf16>, vector<160x10xbf16>, vector<8x10xf32> -> vector<8x10xf32>
    %24 = arith.addf %22, %23 : vector<8x10xf32>
    %cst_7 = arith.constant 9.99999997E-7 : f32
    %25 = vector.broadcast %cst_7 : f32 to vector<8x10xf32>
    %26 = arith.addf %24, %25 : vector<8x10xf32>
    %27 = math.sqrt %26 : vector<8x10xf32>
    %28 = tpu.iota {dimensions = array<i32: 1>} : vector<8x10xi32>
    %29 = vector.broadcast %1 : vector<8x1xi32> to vector<8x10xi32>
    %30 = arith.cmpi eq, %28, %29 : vector<8x10xi32>
    %31 = arith.extui %30 : vector<8x10xi1> to vector<8x10xi32>
    %32 = arith.sitofp %31 : vector<8x10xi32> to vector<8x10xf32>
    %cst_8 = arith.constant 0.899999976 : f32
    %33 = vector.broadcast %cst_8 : f32 to vector<8x10xf32>
    %34 = arith.subf %33, %27 : vector<8x10xf32>
    %cst_9 = arith.constant 0.000000e+00 : f32
    %cst_10 = arith.constant 1.000000e+06 : f32
    %35 = vector.broadcast %cst_9 : f32 to vector<8x10xf32>
    %36 = arith.maximumf %35, %34 : vector<8x10xf32>
    %37 = vector.broadcast %cst_10 : f32 to vector<8x10xf32>
    %38 = arith.minimumf %37, %36 : vector<8x10xf32>
    %cst_11 = arith.constant 1.000000e-01 : f32
    %39 = vector.broadcast %cst_11 : f32 to vector<8x10xf32>
    %40 = arith.subf %27, %39 : vector<8x10xf32>
    %cst_12 = arith.constant 0.000000e+00 : f32
    %cst_13 = arith.constant 1.000000e+06 : f32
    %41 = vector.broadcast %cst_12 : f32 to vector<8x10xf32>
    %42 = arith.maximumf %41, %40 : vector<8x10xf32>
    %43 = vector.broadcast %cst_13 : f32 to vector<8x10xf32>
    %44 = arith.minimumf %43, %42 : vector<8x10xf32>
    %45 = arith.mulf %38, %38 : vector<8x10xf32>
    %46 = arith.mulf %32, %45 : vector<8x10xf32>
    %cst_14 = arith.constant 1.000000e+00 : f32
    %47 = vector.broadcast %cst_14 : f32 to vector<8x10xf32>
    %48 = arith.subf %47, %32 : vector<8x10xf32>
    %49 = arith.mulf %44, %44 : vector<8x10xf32>
    %cst_15 = arith.constant 5.000000e-01 : f32
    %50 = vector.broadcast %cst_15 : f32 to vector<8x10xf32>
    %51 = arith.mulf %50, %49 : vector<8x10xf32>
    %52 = arith.mulf %48, %51 : vector<8x10xf32>
    %53 = arith.addf %46, %52 : vector<8x10xf32>
    %54 = arith.mulf %27, %32 : vector<8x10xf32>
    %cst_16 = arith.constant dense<0.000000e+00> : vector<8xf32>
    %55 = vector.multi_reduction <add>, %54, %cst_16 [1] : vector<8x10xf32> to vector<8xf32>
    %56 = vector.shape_cast %55 : vector<8xf32> to vector<8x1xf32>
    %57 = vector.broadcast %56 : vector<8x1xf32> to vector<8x10xf32>
    %58 = arith.cmpf ogt, %27, %57 : vector<8x10xf32>
    %59 = arith.extui %58 : vector<8x10xi1> to vector<8x10xi32>
    %60 = arith.sitofp %59 : vector<8x10xi32> to vector<8x10xf32>
    %cst_17 = arith.constant dense<0.000000e+00> : vector<8xf32>
    %61 = vector.multi_reduction <add>, %60, %cst_17 [1] : vector<8x10xf32> to vector<8xf32>
    %62 = vector.shape_cast %61 : vector<8xf32> to vector<8x1xf32>
    %cst_18 = arith.constant 1.000000e+00 : f32
    %63 = vector.broadcast %cst_18 : f32 to vector<8x1xf32>
    %64 = arith.cmpf olt, %62, %63 : vector<8x1xf32>
    %65 = arith.extui %64 : vector<8x1xi1> to vector<8x1xi32>
    %66 = arith.sitofp %65 : vector<8x1xi32> to vector<8x1xf32>
    %cst_19 = arith.constant 5.000000e+00 : f32
    %67 = vector.broadcast %cst_19 : f32 to vector<8x1xf32>
    %68 = arith.cmpf olt, %62, %67 : vector<8x1xf32>
    %69 = arith.extui %68 : vector<8x1xi1> to vector<8x1xi32>
    %70 = arith.sitofp %69 : vector<8x1xi32> to vector<8x1xf32>
    %71 = tpu.iota {dimensions = array<i32: 0>} : vector<8x1xi32>
    %c8_i32 = arith.constant 8 : i32
    %72 = arith.muli %arg0, %c8_i32 : i32
    %73 = vector.broadcast %72 : i32 to vector<8x1xi32>
    %74 = arith.addi %73, %71 : vector<8x1xi32>
    %c13_i32 = arith.constant 13 : i32
    %75 = vector.broadcast %c13_i32 : i32 to vector<8x1xi32>
    %76 = arith.cmpi slt, %74, %75 : vector<8x1xi32>
    %cst_20 = arith.constant 0.000000e+00 : f32
    %77 = vector.shape_cast %76 : vector<8x1xi1> to vector<8x1xi1>
    %78 = vector.broadcast %77 : vector<8x1xi1> to vector<8x10xi1>
    %79 = vector.broadcast %cst_20 : f32 to vector<8x10xf32>
    %80 = arith.select %78, %53, %79 : vector<8x10xi1>, vector<8x10xf32>
    %cst_21 = arith.constant 0.000000e+00 : f32
    %81 = vector.broadcast %cst_21 : f32 to vector<8x1xf32>
    %82 = arith.select %76, %66, %81 : vector<8x1xi1>, vector<8x1xf32>
    %cst_22 = arith.constant 0.000000e+00 : f32
    %83 = vector.broadcast %cst_22 : f32 to vector<8x1xf32>
    %84 = arith.select %76, %70, %83 : vector<8x1xi1>, vector<8x1xf32>
    %85 = vector.shape_cast %80 : vector<8x10xf32> to vector<1x8x10xf32>
    %cst_23 = arith.constant dense<0.000000e+00> : vector<1xf32>
    %86 = vector.multi_reduction <add>, %85, %cst_23 [1, 2] : vector<1x8x10xf32> to vector<1xf32>
    %87 = vector.shape_cast %86 : vector<1xf32> to vector<1x1x1xf32>
    %88 = vector.extract %87[0, 0, 0] : f32 from vector<1x1x1xf32>
    %89 = vector.shape_cast %82 : vector<8x1xf32> to vector<1x8x1xf32>
    %cst_24 = arith.constant dense<0.000000e+00> : vector<1xf32>
    %90 = vector.multi_reduction <add>, %89, %cst_24 [1, 2] : vector<1x8x1xf32> to vector<1xf32>
    %91 = vector.shape_cast %90 : vector<1xf32> to vector<1x1x1xf32>
    %92 = vector.extract %91[0, 0, 0] : f32 from vector<1x1x1xf32>
    %93 = vector.shape_cast %84 : vector<8x1xf32> to vector<1x8x1xf32>
    %cst_25 = arith.constant dense<0.000000e+00> : vector<1xf32>
    %94 = vector.multi_reduction <add>, %93, %cst_25 [1, 2] : vector<1x8x1xf32> to vector<1xf32>
    %95 = vector.shape_cast %94 : vector<1xf32> to vector<1x1x1xf32>
    %96 = vector.extract %95[0, 0, 0] : f32 from vector<1x1x1xf32>
    %97 = tpu.iota {dimensions = array<i32: 0>} : vector<8x128xi32>
    %98 = tpu.iota {dimensions = array<i32: 1>} : vector<8x128xi32>
    %c0_i32 = arith.constant 0 : i32
    %99 = vector.broadcast %c0_i32 : i32 to vector<8x128xi32>
    %100 = arith.cmpi eq, %97, %99 : vector<8x128xi32>
    %c0_i32_26 = arith.constant 0 : i32
    %101 = vector.broadcast %c0_i32_26 : i32 to vector<8x128xi32>
    %102 = arith.cmpi eq, %98, %101 : vector<8x128xi32>
    %103 = arith.andi %100, %102 : vector<8x128xi1>
    %c0_i32_27 = arith.constant 0 : i32
    %104 = vector.broadcast %c0_i32_27 : i32 to vector<8x128xi32>
    %105 = arith.cmpi eq, %97, %104 : vector<8x128xi32>
    %c1_i32_28 = arith.constant 1 : i32
    %106 = vector.broadcast %c1_i32_28 : i32 to vector<8x128xi32>
    %107 = arith.cmpi eq, %98, %106 : vector<8x128xi32>
    %108 = arith.andi %105, %107 : vector<8x128xi1>
    %c0_i32_29 = arith.constant 0 : i32
    %109 = vector.broadcast %c0_i32_29 : i32 to vector<8x128xi32>
    %110 = arith.cmpi eq, %97, %109 : vector<8x128xi32>
    %c2_i32 = arith.constant 2 : i32
    %111 = vector.broadcast %c2_i32 : i32 to vector<8x128xi32>
    %112 = arith.cmpi eq, %98, %111 : vector<8x128xi32>
    %113 = arith.andi %110, %112 : vector<8x128xi1>
    %cst_30 = arith.constant 0.000000e+00 : f32
    %114 = vector.broadcast %96 : f32 to vector<8x128xf32>
    %115 = vector.broadcast %cst_30 : f32 to vector<8x128xf32>
    %116 = arith.select %113, %114, %115 : vector<8x128xi1>, vector<8x128xf32>
    %117 = vector.broadcast %92 : f32 to vector<8x128xf32>
    %118 = arith.select %108, %117, %116 : vector<8x128xi1>, vector<8x128xf32>
    %119 = vector.broadcast %88 : f32 to vector<8x128xf32>
    %120 = arith.select %103, %119, %118 : vector<8x128xi1>, vector<8x128xf32>
    %c0_31 = arith.constant 0 : index
    %c0_32 = arith.constant 0 : index
    %c0_33 = arith.constant 0 : index
    %121 = vector.load %arg3[%c0_31, %c0_32, %c0_33] : memref<1x8x128xf32, #tpu.memory_space<vmem>>, vector<1x8x128xf32>
    %122 = vector.shape_cast %121 : vector<1x8x128xf32> to vector<8x128xf32>
    %123 = vector.shape_cast %120 : vector<8x128xf32> to vector<1x8x128xf32>
    tpu.vector_store %arg3[%c0_31, %c0_32, %c0_33], %123 {strides = array<i32>} : memref<1x8x128xf32, #tpu.memory_space<vmem>>, vector<1x8x128xf32>,
    return
  }
  func.func @transform_0(%arg0: i32) -> (i32, i32) {
    %c0_i32 = arith.constant 0 : i32
    %c0_i32_0 = arith.constant 0 : i32
    return %arg0, %c0_i32 : i32, i32
  }
  func.func @transform_1(%arg0: i32) -> (i32, i32) {
    %c0_i32 = arith.constant 0 : i32
    %c0_i32_0 = arith.constant 0 : i32
    return %arg0, %c0_i32 : i32, i32
  }
  func.func @transform_2(%arg0: i32) -> (i32, i32, i32) {
    %c0_i32 = arith.constant 0 : i32
    %c0_i32_0 = arith.constant 0 : i32
    %c0_i32_1 = arith.constant 0 : i32
    return %arg0, %c0_i32, %c0_i32_0 : i32, i32, i32
  }
}

</mosaic_0001>

<llo_original>
// kernel: tpu_custom_call.1
$region0: #{tpu_custom_call.1}
  #allocation0 [shape = 'u32[]', space=smem, size = 0x4, offset = 0x4, fixed_abs, tag = 'smem constant byte address 0x4 - core index']
  #allocation1 [shape = 'u32[144,128]{1,0:T(1,128)}', space=vmem, size = 0x12000, scoped, tag = 'internal scratch']
  %s0 = inlined_call_operand.hbm [shape: f32[13,160], index: 0, kind: input, shape index: {}]
  %s1 = inlined_call_operand.vmem [shape: s32[16,1], index: 1, kind: input, shape index: {}]
  %s2 = inlined_call_operand.hbm [shape: f32[2,8,128], index: 2, kind: output, shape index: {}]
  %s3 = sld [smem:[#allocation0]]
  $region45: #{tpu_custom_call.1} parent=0
    _
  %s5 = ssub.s32 1, %s3
  %s6 = scalar_select 0, %s5, %s3
  $region1: #{tpu_custom_call.1} parent=0
    #allocation2 [shape = 'u8[16384]{0}', space=vmem, size = 0x4000, scoped, tag = 'input window, operand 0']
    #allocation3 [shape = 's32[2]{0}', space=sflag, size = 0x8, scoped, tag = 'scoped memory for tpu_custom_call.1']
    #allocation4 [shape = 's32[2]{0}', space=sflag, size = 0x8, scoped, tag = 'scoped memory for tpu_custom_call.1']
    #allocation5 [shape = 'u8[8192]{0}', space=vmem, size = 0x2000, scoped, tag = 'output window, operand 0']
    %7 = vsyncpa [#allocation3], 0
    %s8 = scalar_lea.sflag [#allocation3], 1
    %9 = vsyncpa %s8, 0
    %10 = vsyncpa [#allocation4], 0
    %s11 = scalar_lea.sflag [#allocation4], 1
    %12 = vsyncpa %s11, 0
    loop: start=0, step=1, limit=4
    $region2: #{tpu_custom_call.1} parent=1 // loop_pre_header
      _
    $region3: #{tpu_custom_call.1} parent=1 // loop_header
      %s14 = sphi 0, %s18
      %p15 = scmp.ge.s32.totalorder %s14, 4
      %s24 = sphi 0, %s26
      %s27 = sphi 0, %s24
      %s28 = sphi 0, %s27
      %s44 = sphi 0, %s28
      %s50 = sphi 0, %s52
      %s53 = sphi 0, %s50
      %s54 = sphi 0, %s53
      %s70 = sphi 0, %s54
      %s76 = sphi 0, %s78
      %s79 = sphi 0, %s76
      %s80 = sphi 0, %s79
      %s96 = sphi 0, %s80
    $region4: #{tpu_custom_call.1} parent=1 // loop_header_branch
      %17 = sbr.rel (%p15) target = $region8
    $region5: #{tpu_custom_call.1} parent=1 // loop_body
      %s19 = ssub.s32 %s14, 1
      %s20 = ssub.s32 %s14, 2
      %s21 = sadd.s32 %s14, 1
      %s22 = ssub.s32 %s14, %s21
      %p23 = scmp.eq.s32.totalorder %s22, 0
      %s25 = sadd.s32 %s24, 1
      %s26 = scalar_select %p23, %s24, %s25
      %p29 = pneg %p23
      %p30 = scmp.eq.s32.totalorder %s14, 1
      %p31 = por %p29, %p30
      %p32 = scmp.ne.s32.totalorder %s24, %s27
      %p33 = scmp.eq.s32.totalorder %s14, 0
      %p34 = por %p32, %p33
      %p35 = scmp.ne.s32.totalorder %s24, %s27
      %p36 = scmp.eq.s32.totalorder %s19, 1
      %p37 = por %p35, %p36
      %p38 = scmp.ne.s32.totalorder %s27, %s28
      %p39 = scmp.eq.s32.totalorder %s19, 0
      %p40 = por %p38, %p39
      %p41 = scmp.ne.s32.totalorder %s27, %s28
      %p42 = scmp.eq.s32.totalorder %s20, 1
      %p43 = por %p41, %p42
      %p45 = scmp.ne.s32.totalorder %s28, %s44
      %p46 = scmp.eq.s32.totalorder %s20, 0
      %p47 = por %p45, %p46
      %s48 = ssub.s32 %s14, %s21
      %p49 = scmp.eq.s32.totalorder %s48, 0
      %s51 = sadd.s32 %s50, 1
      %s52 = scalar_select %p49, %s50, %s51
      %p55 = pneg %p49
      %p56 = scmp.eq.s32.totalorder %s14, 1
      %p57 = por %p55, %p56
      %p58 = scmp.ne.s32.totalorder %s50, %s53
      %p59 = scmp.eq.s32.totalorder %s14, 0
      %p60 = por %p58, %p59
      %p61 = scmp.ne.s32.totalorder %s50, %s53
      %p62 = scmp.eq.s32.totalorder %s19, 1
      %p63 = por %p61, %p62
      %p64 = scmp.ne.s32.totalorder %s53, %s54
      %p65 = scmp.eq.s32.totalorder %s19, 0
      %p66 = por %p64, %p65
      %p67 = scmp.ne.s32.totalorder %s53, %s54
      %p68 = scmp.eq.s32.totalorder %s20, 1
      %p69 = por %p67, %p68
      %p71 = scmp.ne.s32.totalorder %s54, %s70
      %p72 = scmp.eq.s32.totalorder %s20, 0
      %p73 = por %p71, %p72
      %s74 = ssub.s32 %s14, %s21
      %p75 = scmp.eq.s32.totalorder %s74, 0
      %s77 = sadd.s32 %s76, 1
      %s78 = scalar_select %p75, %s76, %s77
      %p81 = pneg %p75
      %p82 = scmp.eq.s32.totalorder %s14, 1
      %p83 = por %p81, %p82
      %p84 = scmp.ne.s32.totalorder %s76, %s79
      %p85 = scmp.eq.s32.totalorder %s14, 0
      %p86 = por %p84, %p85
      %p87 = scmp.ne.s32.totalorder %s76, %s79
      %p88 = scmp.eq.s32.totalorder %s19, 1
      %p89 = por %p87, %p88
      %p90 = scmp.ne.s32.totalorder %s79, %s80
      %p91 = scmp.eq.s32.totalorder %s19, 0
      %p92 = por %p90, %p91
      %p93 = scmp.ne.s32.totalorder %s79, %s80
      %p94 = scmp.eq.s32.totalorder %s20, 1
      %p95 = por %p93, %p94
      %p97 = scmp.ne.s32.totalorder %s80, %s96
      %p98 = scmp.eq.s32.totalorder %s20, 0
      %p99 = por %p97, %p98
      %p100 = scmp.le.s32.totalorder 1, %s14
      %p101 = scmp.lt.s32.totalorder %s14, 3
      %p102 = pnand %p100, %p101
      %p103 = pneg %p102
      // Predicated region
      $region9: #{tpu_custom_call.1} parent=5 // pred_check
        _
      $region10: #{tpu_custom_call.1} parent=5 // pred_check_branch
        %105 = sbr.rel (%p102) target = $region12
      $region11: #{tpu_custom_call.1} parent=5 // pred_region
        %s106 = ssub.s32 %s14, 1
      $region12: #{tpu_custom_call.1} parent=5 // pred_fallthru
        _
      %p107 = scmp.lt.s32.totalorder %s14, 2
      // Predicated region
      $region13: #{tpu_custom_call.1} parent=5 // pred_check
        %p108 = pneg %p107
      $region14: #{tpu_custom_call.1} parent=5 // pred_check_branch
        %110 = sbr.rel (%p108) target = $region16
      $region15: #{tpu_custom_call.1} parent=5 // pred_region
        // Predicated region
        $region17: #{tpu_custom_call.1} parent=15 // pred_check
          %p111 = pneg %p34
        $region18: #{tpu_custom_call.1} parent=15 // pred_check_branch
          %113 = sbr.rel (%p111) target = $region20
        $region19: #{tpu_custom_call.1} parent=15 // pred_region
          %s114 = sand.u32 %s24, 1
          %s115 = scalar_lea.sflag [#allocation3], %s114
          %s116 = sand.u32 %s24, 1
          %s117 = smul.addr %s116, 16
          %s118 = scalar_lea.vmem [#allocation2], %s117
          %s120 = ssub.s32 256, 256
          %121 = vsyncadd %s115, %s120
          %s122 = smul.addr %s14, 2
          %s123 = smul.addr %s122, 128
          %s124 = scalar_lea.hbm %s0, %s123
          %s126 = sshll.u32 %s118, 4
          %s127 = int_to_ptr.vmem [resolvable:$true] %s126
          %129 = dma.hbm_to_vmem [thread:$0]  %s124, 256, %s127, %s115
        $region20: #{tpu_custom_call.1} parent=15 // pred_fallthru
          _
        // Predicated region
        $region21: #{tpu_custom_call.1} parent=15 // pred_check
          %p130 = pneg %p60
        $region22: #{tpu_custom_call.1} parent=15 // pred_check_branch
          %132 = sbr.rel (%p130) target = $region24
        $region23: #{tpu_custom_call.1} parent=15 // pred_region
          %p133 = scmp.lt.s32.totalorder %s14, 1
          %s134 = scalar_select %p133, %s14, 1
          %s135 = smul.addr %s134, 8
          %s136 = scalar_lea.vmem %s1, %s135
        $region24: #{tpu_custom_call.1} parent=15 // pred_fallthru
          _
      $region16: #{tpu_custom_call.1} parent=5 // pred_fallthru
        _
      %p137 = scmp.le.s32.totalorder 1, %s14
      %p138 = scmp.lt.s32.totalorder %s14, 3
      %p139 = pnand %p137, %p138
      %p140 = pneg %p139
      // Predicated region
      $region25: #{tpu_custom_call.1} parent=5 // pred_check
        _
      $region26: #{tpu_custom_call.1} parent=5 // pred_check_branch
        %142 = sbr.rel (%p139) target = $region28
      $region27: #{tpu_custom_call.1} parent=5 // pred_region
        %s143 = ssub.s32 %s14, 1
        %s144 = sand.u32 %s27, 1
        %s145 = scalar_lea.sflag [#allocation3], %s144
        %s146 = sand.u32 %s27, 1
        %s147 = smul.addr %s146, 16
        %s148 = scalar_lea.vmem [#allocation2], %s147
        // Predicated region
        $region29: #{tpu_custom_call.1} parent=27 // pred_check
          %p149 = pneg %p40
        $region30: #{tpu_custom_call.1} parent=27 // pred_check_branch
          %151 = sbr.rel (%p149) target = $region32
        $region31: #{tpu_custom_call.1} parent=27 // pred_region
          %152 = dma.done %s145, 256
        $region32: #{tpu_custom_call.1} parent=27 // pred_fallthru
          _
        %s153 = sand.u32 %s27, 1
        %s154 = scalar_lea.sflag [#allocation3], %s153
        %s155 = sand.u32 %s27, 1
        %s156 = smul.addr %s155, 16
        %s157 = scalar_lea.vmem [#allocation2], %s156
        %p158 = pneg %p40
        %p159 = pneg %p37
        %p160 = scmp.lt.s32.totalorder %s19, 1
        %s161 = scalar_select %p160, %s19, 1
        %s162 = smul.addr %s161, 8
        %s163 = scalar_lea.vmem %s1, %s162
        %p164 = pneg %p66
        %p165 = pneg %p63
        %p166 = pneg %p92
        %p167 = pneg %p89
        %s168 = sand.u32 %s79, 1
        %s169 = scalar_lea.sflag [#allocation4], %s168
        %s170 = sand.u32 %s79, 1
        %s171 = smul.addr %s170, 8
        %s172 = scalar_lea.vmem [#allocation5], %s171
        %p173 = scmp.lt.s32.totalorder %s19, 1
        %s174 = scalar_select %p173, %s19, 1
        %s175 = smul.addr %s174, 8
        %s176 = scalar_lea.vmem %s1, %s175
        %v178 = vld [vmem:[%s148] sm:$0xff]
        %v179 = vld [vmem:[%s148 + $0x8] sm:$0xff]
        %v180 = vld [vmem:[%s176] sm:$0xff]
        %v181 = vlaneseq
        %v182 = vshrl.u32 %v181, 7
        %v183 = vadd.s32 %v182, 8
        %v184 = vadd.s32 %v182, 16
        %v185 = vadd.s32 %v182, 24
        %v186 = vadd.s32 %v182, 32
        %v187 = vadd.s32 %v182, 40
        %v188 = vadd.s32 %v182, 48
        %v189 = vadd.s32 %v182, 56
        %v190 = vadd.s32 %v182, 64
        %v191 = vadd.s32 %v182, 72
        %v192 = vadd.s32 %v182, 80
        %v193 = vadd.s32 %v182, 88
        %v194 = vadd.s32 %v182, 96
        %v195 = vadd.s32 %v182, 104
        %v196 = vadd.s32 %v182, 112
        %v197 = vadd.s32 %v182, 120
        %v198 = vadd.s32 %v182, 128
        %v199 = vadd.s32 %v182, 136
        %v200 = vadd.s32 %v182, 144
        %v201 = vadd.s32 %v182, 152
        %v202 = vlaneseq
        %v203 = vand.u32 %v202, 127
        %v204 = vmul.u32 %v203, 16
        %vm205 = vcmp.ge.s32.totalorder %v182, %v204
        %vm206 = vcmp.ge.s32.totalorder %v183, %v204
        %vm207 = vcmp.ge.s32.totalorder %v184, %v204
        %vm208 = vcmp.ge.s32.totalorder %v185, %v204
        %vm209 = vcmp.ge.s32.totalorder %v186, %v204
        %vm210 = vcmp.ge.s32.totalorder %v187, %v204
        %vm211 = vcmp.ge.s32.totalorder %v188, %v204
        %vm212 = vcmp.ge.s32.totalorder %v189, %v204
        %vm213 = vcmp.ge.s32.totalorder %v190, %v204
        %vm214 = vcmp.ge.s32.totalorder %v191, %v204
        %vm215 = vcmp.ge.s32.totalorder %v192, %v204
        %vm216 = vcmp.ge.s32.totalorder %v193, %v204
        %vm217 = vcmp.ge.s32.totalorder %v194, %v204
        %vm218 = vcmp.ge.s32.totalorder %v195, %v204
        %vm219 = vcmp.ge.s32.totalorder %v196, %v204
        %vm220 = vcmp.ge.s32.totalorder %v197, %v204
        %vm221 = vcmp.ge.s32.totalorder %v198, %v204
        %vm222 = vcmp.ge.s32.totalorder %v199, %v204
        %vm223 = vcmp.ge.s32.totalorder %v200, %v204
        %vm224 = vcmp.ge.s32.totalorder %v201, %v204
        %v225 = vadd.s32 %v203, 1
        %v226 = vmul.u32 %v225, 16
        %vm227 = vcmp.lt.s32.totalorder %v182, %v226
        %vm228 = vcmp.lt.s32.totalorder %v183, %v226
        %vm229 = vcmp.lt.s32.totalorder %v184, %v226
        %vm230 = vcmp.lt.s32.totalorder %v185, %v226
        %vm231 = vcmp.lt.s32.totalorder %v186, %v226
        %vm232 = vcmp.lt.s32.totalorder %v187, %v226
        %vm233 = vcmp.lt.s32.totalorder %v188, %v226
        %vm234 = vcmp.lt.s32.totalorder %v189, %v226
        %vm235 = vcmp.lt.s32.totalorder %v190, %v226
        %vm236 = vcmp.lt.s32.totalorder %v191, %v226
        %vm237 = vcmp.lt.s32.totalorder %v192, %v226
        %vm238 = vcmp.lt.s32.totalorder %v193, %v226
        %vm239 = vcmp.lt.s32.totalorder %v194, %v226
        %vm240 = vcmp.lt.s32.totalorder %v195, %v226
        %vm241 = vcmp.lt.s32.totalorder %v196, %v226
        %vm242 = vcmp.lt.s32.totalorder %v197, %v226
        %vm243 = vcmp.lt.s32.totalorder %v198, %v226
        %vm244 = vcmp.lt.s32.totalorder %v199, %v226
        %vm245 = vcmp.lt.s32.totalorder %v200, %v226
        %vm246 = vcmp.lt.s32.totalorder %v201, %v226
        %vm247 = vmand %vm205, %vm227
        %vm248 = vmand %vm206, %vm228
        %vm249 = vmand %vm207, %vm229
        %vm250 = vmand %vm208, %vm230
        %vm251 = vmand %vm209, %vm231
        %vm252 = vmand %vm210, %vm232
        %vm253 = vmand %vm211, %vm233
        %vm254 = vmand %vm212, %vm234
        %vm255 = vmand %vm213, %vm235
        %vm256 = vmand %vm214, %vm236
        %vm257 = vmand %vm215, %vm237
        %vm258 = vmand %vm216, %vm238
        %vm259 = vmand %vm217, %vm239
        %vm260 = vmand %vm218, %vm240
        %vm261 = vmand %vm219, %vm241
        %vm262 = vmand %vm220, %vm242
        %vm263 = vmand %vm221, %vm243
        %vm264 = vmand %vm222, %vm244
        %vm265 = vmand %vm223, %vm245
        %vm266 = vmand %vm224, %vm246
        %v267 = vsel %vm247, 1.0, 0.0
        %v268 = vsel %vm248, 1.0, 0.0
        %v269 = vsel %vm249, 1.0, 0.0
        %v270 = vsel %vm250, 1.0, 0.0
        %v271 = vsel %vm251, 1.0, 0.0
        %v272 = vsel %vm252, 1.0, 0.0
        %v273 = vsel %vm253, 1.0, 0.0
        %v274 = vsel %vm254, 1.0, 0.0
        %v275 = vsel %vm255, 1.0, 0.0
        %v276 = vsel %vm256, 1.0, 0.0
        %v277 = vsel %vm257, 1.0, 0.0
        %v278 = vsel %vm258, 1.0, 0.0
        %v279 = vsel %vm259, 1.0, 0.0
        %v280 = vsel %vm260, 1.0, 0.0
        %v281 = vsel %vm261, 1.0, 0.0
        %v282 = vsel %vm262, 1.0, 0.0
        %v283 = vsel %vm263, 1.0, 0.0
        %v284 = vsel %vm264, 1.0, 0.0
        %v285 = vsel %vm265, 1.0, 0.0
        %v286 = vsel %vm266, 1.0, 0.0
        %v287 = vpack.c.bf16 %v268, %v267
        %v288 = vpack.c.bf16 %v270, %v269
        %v289 = vpack.c.bf16 %v272, %v271
        %v290 = vpack.c.bf16 %v274, %v273
        %v291 = vpack.c.bf16 %v276, %v275
        %v292 = vpack.c.bf16 %v278, %v277
        %v293 = vpack.c.bf16 %v280, %v279
        %v294 = vpack.c.bf16 %v282, %v281
        %v295 = vpack.c.bf16 %v284, %v283
        %v296 = vpack.c.bf16 %v286, %v285
        %v297 = vmul.f32 %v178, %v178
        %v298 = vmul.f32 %v179, %v179
        %v299 = vpack.c.bf16 %v297, %v297
        %v300 = vpack.c.bf16 %v298, %v298
        %v301 = vunpack.c.l.bf16 %v299
        %v302 = vunpack.c.l.bf16 %v300
        %v303 = vsub.f32 %v297, %v301
        %v304 = vsub.f32 %v298, %v302
        %v305 = vpack.c.bf16 %v303, %v303
        %v306 = vpack.c.bf16 %v304, %v304
        %vm307 = vcmask 261120
        %v309 = vsel %vm307, %v306, 0
        %311 = vmatprep.subr.bf16.mxu0 0
        %312 = vmatpush1.bf16.msra.mxu0 %v287
        %313 = vmatprep.subr.bf16.mxu0 0
        %314 = vmatpush1.bf16.msra.mxu0 %v288
        %315 = vmatprep.subr.bf16.mxu0 0
        %316 = vmatpush1.bf16.msra.mxu0 %v289
        %317 = vmatprep.subr.bf16.mxu0 0
        %318 = vmatpush1.bf16.msra.mxu0 %v290
        %319 = vmatprep.subr.bf16.mxu0 0
        %320 = vmatpush1.bf16.msra.mxu0 %v291
        %321 = vmatprep.subr.bf16.mxu0 0
        %322 = vmatpush1.bf16.msra.mxu0 %v292
        %323 = vmatprep.subr.bf16.mxu0 0
        %324 = vmatpush1.bf16.msra.mxu0 %v293
        %325 = vmatprep.subr.bf16.mxu0 0
        %326 = vmatpush1.bf16.msra.mxu0 %v294
        %327 = vmatprep.subr.bf16.mxu0 0
        %328 = vmatpush1.bf16.msra.mxu0 %v295
        %329 = vmatprep.subr.bf16.mxu0 0
        %330 = vmatpush1.bf16.msra.mxu0 %v296
        %331 = vmatprep.subr.bf16.mxu0 0
        %332 = vmatpush1.bf16.msra.mxu0 0
        %333 = vmatprep.subr.bf16.mxu0 0
        %334 = vmatpush1.bf16.msra.mxu0 0
        %335 = vmatprep.subr.bf16.mxu0 0
        %336 = vmatpush1.bf16.msra.mxu0 0
        %337 = vmatprep.subr.bf16.mxu0 0
        %338 = vmatpush1.bf16.msra.mxu0 0
        %339 = vmatprep.subr.bf16.mxu0 0
        %340 = vmatpush1.bf16.msra.mxu0 0
        %341 = vmatprep.subr.bf16.mxu0 0
        %342 = vmatpush1.bf16.msra.mxu0 0
        %343 = vmatprep.mubr.bf16.mxu0 %v309
        %344 = vmatmul.mubr.bf16.gmra.mrb[0].mxu0 %v305
        %v345 = vpop.f32.mrb[0].mxu0
        %v346 = vadd.f32 0.0, %v345
        %v347 = vpop.f32.mrb[0].mxu0
        %v348 = vpop.f32.mrb[0].mxu0
        %v349 = vpop.f32.mrb[0].mxu0
        %350 = vdwg.mxu0
        %v352 = vsel %vm307, %v300, 0
        %354 = vmatprep.subr.bf16.mxu0 0
        %355 = vmatpush1.bf16.msra.mxu0 %v287
        %356 = vmatprep.subr.bf16.mxu0 0
        %357 = vmatpush1.bf16.msra.mxu0 %v288
        %358 = vmatprep.subr.bf16.mxu0 0
        %359 = vmatpush1.bf16.msra.mxu0 %v289
        %360 = vmatprep.subr.bf16.mxu0 0
        %361 = vmatpush1.bf16.msra.mxu0 %v290
        %362 = vmatprep.subr.bf16.mxu0 0
        %363 = vmatpush1.bf16.msra.mxu0 %v291
        %364 = vmatprep.subr.bf16.mxu0 0
        %365 = vmatpush1.bf16.msra.mxu0 %v292
        %366 = vmatprep.subr.bf16.mxu0 0
        %367 = vmatpush1.bf16.msra.mxu0 %v293
        %368 = vmatprep.subr.bf16.mxu0 0
        %369 = vmatpush1.bf16.msra.mxu0 %v294
        %370 = vmatprep.subr.bf16.mxu0 0
        %371 = vmatpush1.bf16.msra.mxu0 %v295
        %372 = vmatprep.subr.bf16.mxu0 0
        %373 = vmatpush1.bf16.msra.mxu0 %v296
        %374 = vmatprep.subr.bf16.mxu0 0
        %375 = vmatpush1.bf16.msra.mxu0 0
        %376 = vmatprep.subr.bf16.mxu0 0
        %377 = vmatpush1.bf16.msra.mxu0 0
        %378 = vmatprep.subr.bf16.mxu0 0
        %379 = vmatpush1.bf16.msra.mxu0 0
        %380 = vmatprep.subr.bf16.mxu0 0
        %381 = vmatpush1.bf16.msra.mxu0 0
        %382 = vmatprep.subr.bf16.mxu0 0
        %383 = vmatpush1.bf16.msra.mxu0 0
        %384 = vmatprep.subr.bf16.mxu0 0
        %385 = vmatpush1.bf16.msra.mxu0 0
        %386 = vmatprep.mubr.bf16.mxu0 %v352
        %387 = vmatmul.mubr.bf16.gmra.mrb[0].mxu0 %v299
        %v388 = vpop.f32.mrb[0].mxu0
        %v389 = vadd.f32 %v346, %v388
        %v390 = vpop.f32.mrb[0].mxu0
        %v391 = vpop.f32.mrb[0].mxu0
        %v392 = vpop.f32.mrb[0].mxu0
        %393 = vdwg.mxu0
        %v394 = vadd.f32 %v389, 1e-06
        %v395 = vrsqrt.pop %v394
        %v396 = vmul.f32 %v394, %v395
        %vm397 = vcmp.eq.f32.partialorder %v394, inf
        %v398 = vsel %vm397, %v394, %v396
        %vm399 = vcmp.eq.f32.partialorder %v394, 0.0
        %v400 = vand.u32 %v394, 2147483648
        %v401 = vsel %vm399, %v400, %v398
        %402 = vset.pattern.permute.xlu0 0
        %403 = vperm.xlu0 %402, %v180
        %v404 = vpop.permute.xlu0 %403
        %vm405 = vcmp.eq.s32.totalorder %v203, %v404
        %v406 = vsel %vm405, 1, 0
        %v407 = vcvt.s32.f32 %v406
        %v408 = vsub.f32 0.9, %v401
        %v409 = vmax.f32 %v408, 0.0
        %v410 = vmin.f32 %v409, 1000000.0
        %v411 = vsub.f32 %v401, 0.1
        %v412 = vmax.f32 %v411, 0.0
        %v413 = vmin.f32 %v412, 1000000.0
        %v414 = vmul.f32 %v410, %v410
        %v415 = vmul.f32 %v407, %v414
        %v416 = vsub.f32 1.0, %v407
        %v417 = vmul.f32 %v413, %v413
        %v418 = vmul.f32 %v417, 0.5
        %v419 = vmul.f32 %v416, %v418
        %v420 = vadd.f32 %v415, %v419
        %v421 = vmul.f32 %v401, %v407
        %vm422 = vcmask 80896
        %v423 = vsel %vm422, %v421, 0.0
        %424 = vadd.xlane.f32.xlu0 %v423
        %v425 = vpop.xlane.xlu0 %424
        %vm426 = vcmp.gt.f32.partialorder %v401, %v425
        %v427 = vsel %vm426, 1, 0
        %v428 = vcvt.s32.f32 %v427
        %v429 = vsel %vm422, %v428, 0.0
        %430 = vadd.xlane.f32.xlu0 %v429
        %v431 = vpop.xlane.xlu0 %430
        %vm432 = vcmp.lt.f32.partialorder %v431, 1.0
        %v433 = vsel %vm432, 1, 0
        %v434 = vcvt.s32.f32 %v433
        %vm435 = vcmp.lt.f32.partialorder %v431, 5.0
        %v436 = vsel %vm435, 1, 0
        %v437 = vcvt.s32.f32 %v436
        %s438 = smul.u32 %s19, 8
        %v439 = vstv %s438
        %v440 = vadd.s32 %v439, %v182
        %vm441 = vcmp.lt.s32.totalorder %v440, 13
        %v442 = vsel %vm441, 1, 0
        %vm443 = vcmp.eq.s32.totalorder %v442, 1
        %v444 = vsel %vm443, %v420, 0.0
        %v445 = vsel %vm441, %v434, 0.0
        %v446 = vsel %vm441, %v437, 0.0
        %v447 = vsel %vm422, %v444, 0.0
        %448 = vadd.xlane.f32.xlu0 %v447
        %v449 = vpop.xlane.xlu0 %448
        %v450 = vrot.slane %v449, 4
        %v451 = vadd.f32 %v449, %v450
        %v452 = vrot.slane %v451, 2
        %v453 = vadd.f32 %v451, %v452
        %v454 = vrot.slane %v453, 1
        %v455 = vadd.f32 %v453, %v454
        %s456 = vtos %v455
        %vm457 = vcmask 7168
        %v458 = vsel %vm457, %v445, 0.0
        %459 = vadd.xlane.f32.xlu0 %v458
        %v460 = vpop.xlane.xlu0 %459
        %v461 = vrot.slane %v460, 4
        %v462 = vadd.f32 %v460, %v461
        %v463 = vrot.slane %v462, 2
        %v464 = vadd.f32 %v462, %v463
        %v465 = vrot.slane %v464, 1
        %v466 = vadd.f32 %v464, %v465
        %s467 = vtos %v466
        %v468 = vsel %vm457, %v446, 0.0
        %469 = vadd.xlane.f32.xlu0 %v468
        %v470 = vpop.xlane.xlu0 %469
        %v471 = vrot.slane %v470, 4
        %v472 = vadd.f32 %v470, %v471
        %v473 = vrot.slane %v472, 2
        %v474 = vadd.f32 %v472, %v473
        %v475 = vrot.slane %v474, 1
        %v476 = vadd.f32 %v474, %v475
        %s477 = vtos %v476
        %vm478 = vcmp.eq.s32.totalorder %v182, 0
        %vm479 = vcmp.eq.s32.totalorder %v203, 0
        %vm480 = vmand %vm478, %vm479
        %vm481 = vcmp.eq.s32.totalorder %v203, 1
        %vm482 = vmand %vm478, %vm481
        %vm483 = vcmp.eq.s32.totalorder %v203, 2
        %vm484 = vmand %vm478, %vm483
        %v485 = vstv %s477
        %v486 = vsel %vm484, %v485, 0.0
        %v487 = vstv %s467
        %v488 = vsel %vm482, %v487, %v486
        %v489 = vstv %s456
        %v490 = vsel %vm480, %v489, %v488
        %491 = vst [vmem:[%s172] sm:$0xff] %v490
        %s492 = sand.u32 %s79, 1
        %s493 = scalar_lea.sflag [#allocation4], %s492
        %s494 = sand.u32 %s79, 1
        %s495 = smul.addr %s494, 8
        %s496 = scalar_lea.vmem [#allocation5], %s495
        // Predicated region
        $region33: #{tpu_custom_call.1} parent=27 // pred_check
          %p497 = pneg %p89
        $region34: #{tpu_custom_call.1} parent=27 // pred_check_branch
          %499 = sbr.rel (%p497) target = $region36
        $region35: #{tpu_custom_call.1} parent=27 // pred_region
          %s501 = ssub.s32 128, 128
          %502 = vsyncadd %s493, %s501
          %s503 = smul.addr %s19, 128
          %s504 = scalar_lea.hbm %s2, %s503
          %s506 = sshll.u32 %s496, 4
          %s507 = int_to_ptr.vmem [resolvable:$true] %s506
          %509 = dma.vmem_to_hbm [thread:$0]  %s507, 128, %s504, %s493
        $region36: #{tpu_custom_call.1} parent=27 // pred_fallthru
          _
      $region28: #{tpu_custom_call.1} parent=5 // pred_fallthru
        _
      %p510 = scmp.le.s32.totalorder 2, %s14
      // Predicated region
      $region37: #{tpu_custom_call.1} parent=5 // pred_check
        %p511 = pneg %p510
      $region38: #{tpu_custom_call.1} parent=5 // pred_check_branch
        %513 = sbr.rel (%p511) target = $region40
      $region39: #{tpu_custom_call.1} parent=5 // pred_region
        %s514 = ssub.s32 %s14, 2
        // Predicated region
        $region41: #{tpu_custom_call.1} parent=39 // pred_check
          %p515 = pneg %p95
        $region42: #{tpu_custom_call.1} parent=39 // pred_check_branch
          %517 = sbr.rel (%p515) target = $region44
        $region43: #{tpu_custom_call.1} parent=39 // pred_region
          %s518 = sand.u32 %s80, 1
          %s519 = scalar_lea.sflag [#allocation4], %s518
          %s520 = sand.u32 %s80, 1
          %s521 = smul.addr %s520, 8
          %s522 = scalar_lea.vmem [#allocation5], %s521
          %523 = dma.done %s519, 128
        $region44: #{tpu_custom_call.1} parent=39 // pred_fallthru
          _
      $region40: #{tpu_custom_call.1} parent=5 // pred_fallthru
        _
    $region6: #{tpu_custom_call.1} parent=1 // loop_footer
      %s18 = sadd.s32 1, %s14
    $region7: #{tpu_custom_call.1} parent=1 // loop_footer_branch
      %13 = sbr.rel target = $region3
    $region8: #{tpu_custom_call.1} parent=1 // loop_exit
      _
    %524 = vsyncpa [#allocation3], 1
    %s525 = scalar_lea.sflag [#allocation3], 1
    %526 = vsyncpa %s525, 1
    %527 = vsyncpa [#allocation4], 1
    %s528 = scalar_lea.sflag [#allocation4], 1
    %529 = vsyncpa %s528, 1

</llo_original>
